<compile_context>
chip_gen: v7x
topology: tpu7x:2x2x1
jax: 0.10.0
libtpu: 0.0.40
codegen_flags: <defaults>
</compile_context>

<pallas_src>
import functools

import jax
import jax.numpy as jnp
from jax.experimental import pallas as pl
from jax.experimental.pallas import tpu as pltpu

# Padded feature sizes (lane multiples of 128).
_H = 128    # hidden width of l1/l2 (exactly 128)
_H3 = 128   # 30 -> 128
_A = 128    # action_dim -> 128


def _round_up(x, m):
    return ((x + m - 1) // m) * m


def _choose_tile(B):
    """Batch tile: >=2 grid steps when possible (v7x megacore), capped at 1024
    rows, bucketed to 128-row multiples to bound recompiles."""
    tb = -(-B // 2)                  # ceil(B / 2)
    tb = _round_up(max(tb, 1), 128)
    return max(128, min(1024, tb))


def _actor_kernel(max_action,
                  sa_ref, w1_ref, b1_ref, w2_ref, b2_ref,
                  w3_ref, b3_ref, w4_ref, b4_ref, out_ref):
    """Runs one (TB, k1) batch tile through the whole 4-layer MLP.

    All matmuls use DEFAULT precision (bf16 MXU passes) with f32 accumulation.
    """
    h = jnp.dot(sa_ref[...], w1_ref[...], preferred_element_type=jnp.float32)
    h = jnp.maximum(h + b1_ref[...], 0.0)

    h = jnp.dot(h, w2_ref[...], preferred_element_type=jnp.float32)
    h = jnp.maximum(h + b2_ref[...], 0.0)

    h = jnp.dot(h, w3_ref[...], preferred_element_type=jnp.float32)
    h = jnp.maximum(h + b3_ref[...], 0.0)

    h = jnp.dot(h, w4_ref[...], preferred_element_type=jnp.float32)
    out_ref[...] = max_action * jnp.tanh(h + b4_ref[...])


def _pad2(w, rows, cols):
    out = jnp.zeros((rows, cols), jnp.float32)
    return out.at[: w.shape[0], : w.shape[1]].set(w.astype(jnp.float32))


def _pad_bias(b, cols):
    out = jnp.zeros((1, cols), jnp.float32)
    return out.at[0, : b.shape[0]].set(b.astype(jnp.float32))


def pad_actor_params(params):
    """Pad weights/biases to TPU-friendly shapes ONCE; reuse on every forward."""
    w1, b1, w2, b2, w3, b3, w4, b4 = params
    k1 = _round_up(w1.shape[0], 8)          # (state_dim + 1) -> sublane multiple
    return (_pad2(w1, k1, _H), _pad_bias(b1, _H),
            _pad2(w2, _H, _H), _pad_bias(b2, _H),
            _pad2(w3, _H, _H3), _pad_bias(b3, _H3),
            _pad2(w4, _H3, _A), _pad_bias(b4, _A))


@functools.partial(jax.jit, static_argnames=("max_action", "action_dim"))
def actor_forward(state, target, padded_params, max_action, action_dim):
    """state: (B, state_dim) f32, target: (B,) f32 -> (B, action_dim) f32."""
    w1_p, b1_p, w2_p, b2_p, w3_p, b3_p, w4_p, b4_p = padded_params
    B, state_dim = state.shape
    k1 = w1_p.shape[0]                      # padded concat width (e.g. 8)

    tb = _choose_tile(B)
    Bp = _round_up(B, tb)
    nb = Bp // tb

    # Narrow concat buffer [state | target | zeros]: only (Bp, k1) f32, not a
    # (Bp, 128) slab.  Rows >= B are zero padding (wasted compute only; they
    # are sliced off below).
    sa = jnp.zeros((Bp, k1), jnp.float32)
    sa = sa.at[:B, :state_dim].set(state.astype(jnp.float32))
    sa = sa.at[:B, state_dim].set(target.astype(jnp.float32))

    # Weights/biases: constant index maps -> fetched once, VMEM-resident.
    resident = lambda shape: pl.BlockSpec(shape, lambda i: (0, 0))

    out_p = pl.pallas_call(
        functools.partial(_actor_kernel, float(max_action)),
        out_shape=jax.ShapeDtypeStruct((Bp, _A), jnp.float32),
        grid=(nb,),
        in_specs=[
            pl.BlockSpec((tb, k1), lambda i: (i, 0)),   # batch-blocked input
            resident((k1, _H)), resident((1, _H)),
            resident((_H, _H)), resident((1, _H)),
            resident((_H, _H3)), resident((1, _H3)),
            resident((_H3, _A)), resident((1, _A)),
        ],
        out_specs=pl.BlockSpec((tb, _A), lambda i: (i, 0)),
        compiler_params=pltpu.CompilerParams(
            dimension_semantics=("parallel",),   # shard batch tiles across TCs
            vmem_limit_bytes=32 << 20,
        ),
    )(sa, w1_p, b1_p, w2_p, b2_p, w3_p, b3_p, w4_p, b4_p)

    return out_p[:B, :action_dim]


def init_actor_params(key, state_dim, action_dim):
    """Deterministic init mimicking nn.Linear's U(-1/sqrt(fan_in), 1/sqrt(fan_in))."""
    dims = [(state_dim + 1, 128), (128, 128), (128, 30), (30, action_dim)]
    params = []
    for fan_in, fan_out in dims:
        key, kw, kb = jax.random.split(key, 3)
        bound = float(fan_in) ** -0.5
        w = jax.random.uniform(kw, (fan_in, fan_out), jnp.float32, -bound, bound)
        b = jax.random.uniform(kb, (fan_out,), jnp.float32, -bound, bound)
        params.extend([w, b])
    return tuple(params)


def actor_reference(state, target, params, max_action):
    """Pure-JAX reference at matching (DEFAULT) matmul precision."""
    w1, b1, w2, b2, w3, b3, w4, b4 = params
    sa = jnp.concatenate([state, target[:, None]], axis=1)
    a = jax.nn.relu(jnp.dot(sa, w1) + b1)
    a = jax.nn.relu(jnp.dot(a, w2) + b2)
    a = jax.nn.relu(jnp.dot(a, w3) + b3)
    return max_action * jnp.tanh(jnp.dot(a, w4) + b4)


if __name__ == "__main__":
    key = jax.random.PRNGKey(0)
    B, state_dim, action_dim, max_action = 2, 4, 3, 2.0

    k_params, k_state, k_target = jax.random.split(key, 3)
    params = init_actor_params(k_params, state_dim, action_dim)
    state = jax.random.normal(k_state, (B, state_dim), jnp.float32)
    target = jax.random.normal(k_target, (B,), jnp.float32)

    # One-time parameter padding (hoisted out of the forward hot path).
    padded_params = jax.block_until_ready(pad_actor_params(params))

    out = actor_forward(state, target, padded_params, max_action, action_dim)
    out = jax.block_until_ready(out)

    ref = actor_reference(state, target, params, max_action)
    assert out.shape == (B, action_dim)
    assert jnp.allclose(out, ref, atol=5e-3, rtol=5e-3), "mismatch vs reference"

    print("KERNEL_OK")
</pallas_src>

<mosaic_0001>
module attributes {stable_mosaic.version = 11 : i64} {
  func.func @_actor_kernel(%arg0: i32, %arg1: memref<128x8xf32, #tpu.memory_space<vmem>>, %arg2: memref<8x128xf32, #tpu.memory_space<vmem>>, %arg3: memref<1x128xf32, #tpu.memory_space<vmem>>, %arg4: memref<128x128xf32, #tpu.memory_space<vmem>>, %arg5: memref<1x128xf32, #tpu.memory_space<vmem>>, %arg6: memref<128x128xf32, #tpu.memory_space<vmem>>, %arg7: memref<1x128xf32, #tpu.memory_space<vmem>>, %arg8: memref<128x128xf32, #tpu.memory_space<vmem>>, %arg9: memref<1x128xf32, #tpu.memory_space<vmem>>, %arg10: memref<128x128xf32, #tpu.memory_space<vmem>>) attributes {dimension_semantics = [#tpu.dimension_semantics<parallel>], iteration_bounds = array<i64: 1>, scalar_prefetch = 0 : i64, scratch_operands = 0 : i64, tpu.core_type = #tpu.core_type<tc>, window_params = [{transform_indices = @transform_0, window_bounds = array<i64: 128, 8>}, {pipeline_mode = #tpu.pipeline_mode<synchronous>, transform_indices = @transform_1, window_bounds = array<i64: 8, 128>}, {pipeline_mode = #tpu.pipeline_mode<synchronous>, transform_indices = @transform_2, window_bounds = array<i64: 1, 128>}, {pipeline_mode = #tpu.pipeline_mode<synchronous>, transform_indices = @transform_3, window_bounds = array<i64: 128, 128>}, {pipeline_mode = #tpu.pipeline_mode<synchronous>, transform_indices = @transform_4, window_bounds = array<i64: 1, 128>}, {pipeline_mode = #tpu.pipeline_mode<synchronous>, transform_indices = @transform_5, window_bounds = array<i64: 128, 128>}, {pipeline_mode = #tpu.pipeline_mode<synchronous>, transform_indices = @transform_6, window_bounds = array<i64: 1, 128>}, {pipeline_mode = #tpu.pipeline_mode<synchronous>, transform_indices = @transform_7, window_bounds = array<i64: 128, 128>}, {pipeline_mode = #tpu.pipeline_mode<synchronous>, transform_indices = @transform_8, window_bounds = array<i64: 1, 128>}, {transform_indices = @transform_9, window_bounds = array<i64: 128, 128>}]} {
    %c0 = arith.constant 0 : index
    %c0_0 = arith.constant 0 : index
    %0 = vector.load %arg1[%c0, %c0_0] : memref<128x8xf32, #tpu.memory_space<vmem>>, vector<128x8xf32>
    %c0_1 = arith.constant 0 : index
    %c0_2 = arith.constant 0 : index
    %1 = vector.load %arg2[%c0_1, %c0_2] : memref<8x128xf32, #tpu.memory_space<vmem>>, vector<8x128xf32>
    %cst = arith.constant dense<0.000000e+00> : vector<128x128xf32>
    %2 = tpu.matmul %0, %1, %cst {dimension_numbers = #tpu.dot_dimension_numbers<[1], [0], [0], [1], [0, 0, 1, 1], [], []>} : vector<128x8xf32>, vector<8x128xf32>, vector<128x128xf32> -> vector<128x128xf32>
    %c0_3 = arith.constant 0 : index
    %c0_4 = arith.constant 0 : index
    %3 = vector.load %arg3[%c0_3, %c0_4] : memref<1x128xf32, #tpu.memory_space<vmem>>, vector<1x128xf32>
    %4 = vector.broadcast %3 : vector<1x128xf32> to vector<128x128xf32>
    %5 = arith.addf %2, %4 : vector<128x128xf32>
    %cst_5 = arith.constant 0.000000e+00 : f32
    %6 = vector.broadcast %cst_5 : f32 to vector<128x128xf32>
    %7 = arith.maximumf %5, %6 : vector<128x128xf32>
    %c0_6 = arith.constant 0 : index
    %c0_7 = arith.constant 0 : index
    %8 = vector.load %arg4[%c0_6, %c0_7] : memref<128x128xf32, #tpu.memory_space<vmem>>, vector<128x128xf32>
    %cst_8 = arith.constant dense<0.000000e+00> : vector<128x128xf32>
    %9 = tpu.matmul %7, %8, %cst_8 {dimension_numbers = #tpu.dot_dimension_numbers<[1], [0], [0], [1], [0, 0, 1, 1], [], []>} : vector<128x128xf32>, vector<128x128xf32>, vector<128x128xf32> -> vector<128x128xf32>
    %c0_9 = arith.constant 0 : index
    %c0_10 = arith.constant 0 : index
    %10 = vector.load %arg5[%c0_9, %c0_10] : memref<1x128xf32, #tpu.memory_space<vmem>>, vector<1x128xf32>
    %11 = vector.broadcast %10 : vector<1x128xf32> to vector<128x128xf32>
    %12 = arith.addf %9, %11 : vector<128x128xf32>
    %cst_11 = arith.constant 0.000000e+00 : f32
    %13 = vector.broadcast %cst_11 : f32 to vector<128x128xf32>
    %14 = arith.maximumf %12, %13 : vector<128x128xf32>
    %c0_12 = arith.constant 0 : index
    %c0_13 = arith.constant 0 : index
    %15 = vector.load %arg6[%c0_12, %c0_13] : memref<128x128xf32, #tpu.memory_space<vmem>>, vector<128x128xf32>
    %cst_14 = arith.constant dense<0.000000e+00> : vector<128x128xf32>
    %16 = tpu.matmul %14, %15, %cst_14 {dimension_numbers = #tpu.dot_dimension_numbers<[1], [0], [0], [1], [0, 0, 1, 1], [], []>} : vector<128x128xf32>, vector<128x128xf32>, vector<128x128xf32> -> vector<128x128xf32>
    %c0_15 = arith.constant 0 : index
    %c0_16 = arith.constant 0 : index
    %17 = vector.load %arg7[%c0_15, %c0_16] : memref<1x128xf32, #tpu.memory_space<vmem>>, vector<1x128xf32>
    %18 = vector.broadcast %17 : vector<1x128xf32> to vector<128x128xf32>
    %19 = arith.addf %16, %18 : vector<128x128xf32>
    %cst_17 = arith.constant 0.000000e+00 : f32
    %20 = vector.broadcast %cst_17 : f32 to vector<128x128xf32>
    %21 = arith.maximumf %19, %20 : vector<128x128xf32>
    %c0_18 = arith.constant 0 : index
    %c0_19 = arith.constant 0 : index
    %22 = vector.load %arg8[%c0_18, %c0_19] : memref<128x128xf32, #tpu.memory_space<vmem>>, vector<128x128xf32>
    %cst_20 = arith.constant dense<0.000000e+00> : vector<128x128xf32>
    %23 = tpu.matmul %21, %22, %cst_20 {dimension_numbers = #tpu.dot_dimension_numbers<[1], [0], [0], [1], [0, 0, 1, 1], [], []>} : vector<128x128xf32>, vector<128x128xf32>, vector<128x128xf32> -> vector<128x128xf32>
    %c0_21 = arith.constant 0 : index
    %c0_22 = arith.constant 0 : index
    %24 = vector.load %arg9[%c0_21, %c0_22] : memref<1x128xf32, #tpu.memory_space<vmem>>, vector<1x128xf32>
    %25 = vector.broadcast %24 : vector<1x128xf32> to vector<128x128xf32>
    %26 = arith.addf %23, %25 : vector<128x128xf32>
    %27 = math.tanh %26 : vector<128x128xf32>
    %cst_23 = arith.constant 2.000000e+00 : f32
    %28 = vector.broadcast %cst_23 : f32 to vector<128x128xf32>
    %29 = arith.mulf %28, %27 : vector<128x128xf32>
    %c0_24 = arith.constant 0 : index
    %c0_25 = arith.constant 0 : index
    %30 = vector.load %arg10[%c0_24, %c0_25] : memref<128x128xf32, #tpu.memory_space<vmem>>, vector<128x128xf32>
    tpu.vector_store %arg10[%c0_24, %c0_25], %29 {strides = array<i32>} : memref<128x128xf32, #tpu.memory_space<vmem>>, vector<128x128xf32>,
    return
  }
  func.func @transform_0(%arg0: i32) -> (i32, i32) {
    %c0_i32 = arith.constant 0 : i32
    %c0_i32_0 = arith.constant 0 : i32
    return %arg0, %c0_i32 : i32, i32
  }
  func.func @transform_1(%arg0: i32) -> (i32, i32) {
    %c0_i32 = arith.constant 0 : i32
    %c0_i32_0 = arith.constant 0 : i32
    %c0_i32_1 = arith.constant 0 : i32
    return %c0_i32, %c0_i32_0 : i32, i32
  }
  func.func @transform_2(%arg0: i32) -> (i32, i32) {
    %c0_i32 = arith.constant 0 : i32
    %c0_i32_0 = arith.constant 0 : i32
    %c0_i32_1 = arith.constant 0 : i32
    return %c0_i32, %c0_i32_0 : i32, i32
  }
  func.func @transform_3(%arg0: i32) -> (i32, i32) {
    %c0_i32 = arith.constant 0 : i32
    %c0_i32_0 = arith.constant 0 : i32
    %c0_i32_1 = arith.constant 0 : i32
    return %c0_i32, %c0_i32_0 : i32, i32
  }
  func.func @transform_4(%arg0: i32) -> (i32, i32) {
    %c0_i32 = arith.constant 0 : i32
    %c0_i32_0 = arith.constant 0 : i32
    %c0_i32_1 = arith.constant 0 : i32
    return %c0_i32, %c0_i32_0 : i32, i32
  }
  func.func @transform_5(%arg0: i32) -> (i32, i32) {
    %c0_i32 = arith.constant 0 : i32
    %c0_i32_0 = arith.constant 0 : i32
    %c0_i32_1 = arith.constant 0 : i32
    return %c0_i32, %c0_i32_0 : i32, i32
  }
  func.func @transform_6(%arg0: i32) -> (i32, i32) {
    %c0_i32 = arith.constant 0 : i32
    %c0_i32_0 = arith.constant 0 : i32
    %c0_i32_1 = arith.constant 0 : i32
    return %c0_i32, %c0_i32_0 : i32, i32
  }
  func.func @transform_7(%arg0: i32) -> (i32, i32) {
    %c0_i32 = arith.constant 0 : i32
    %c0_i32_0 = arith.constant 0 : i32
    %c0_i32_1 = arith.constant 0 : i32
    return %c0_i32, %c0_i32_0 : i32, i32
  }
  func.func @transform_8(%arg0: i32) -> (i32, i32) {
    %c0_i32 = arith.constant 0 : i32
    %c0_i32_0 = arith.constant 0 : i32
    %c0_i32_1 = arith.constant 0 : i32
    return %c0_i32, %c0_i32_0 : i32, i32
  }
  func.func @transform_9(%arg0: i32) -> (i32, i32) {
    %c0_i32 = arith.constant 0 : i32
    %c0_i32_0 = arith.constant 0 : i32
    return %arg0, %c0_i32 : i32, i32
  }
}

</mosaic_0001>

<llo_original>
// kernel: actor_forward.1
$region0: #{actor_forward.1}
  #allocation0 [shape = 'u32[]', space=smem, size = 0x4, offset = 0x4, fixed_abs, tag = 'smem constant byte address 0x4 - core index']
  #allocation1 [shape = 'u32[144,128]{1,0:T(1,128)}', space=vmem, size = 0x12000, scoped, tag = 'internal scratch']
  %s0 = inlined_call_operand.vmem [shape: f32[128,8], index: 0, kind: input, shape index: {}]
  %s1 = inlined_call_operand.vmem [shape: f32[8,128], index: 1, kind: input, shape index: {}]
  %s2 = inlined_call_operand.vmem [shape: f32[1,128], index: 2, kind: input, shape index: {}]
  %s3 = inlined_call_operand.vmem [shape: f32[128,128], index: 3, kind: input, shape index: {}]
  %s4 = inlined_call_operand.vmem [shape: f32[1,128], index: 4, kind: input, shape index: {}]
  %s5 = inlined_call_operand.hbm [shape: f32[128,128], index: 5, kind: input, shape index: {}]
  %s6 = inlined_call_operand.vmem [shape: f32[1,128], index: 6, kind: input, shape index: {}]
  %s7 = inlined_call_operand.hbm [shape: f32[128,128], index: 7, kind: input, shape index: {}]
  %s8 = inlined_call_operand.vmem [shape: f32[1,128], index: 8, kind: input, shape index: {}]
  %s9 = inlined_call_operand.vmem [shape: f32[128,128], index: 9, kind: output, shape index: {}]
  %s10 = sld [smem:[#allocation0]]
  $region54: #{actor_forward.1} parent=0
    _
  %s12 = ssub.s32 1, %s10
  %s13 = scalar_select 0, %s12, %s10
  $region1: #{actor_forward.1} parent=0
    #allocation2 [shape = 'u8[65536]{0}', space=vmem, size = 0x10000, scoped, tag = 'input window, operand 5, single buffered']
    #allocation3 [shape = 's32[1]{0}', space=sflag, size = 0x4, scoped, tag = 'scoped memory for actor_forward.1']
    #allocation4 [shape = 'u8[65536]{0}', space=vmem, size = 0x10000, scoped, tag = 'input window, operand 7, single buffered']
    #allocation5 [shape = 's32[1]{0}', space=sflag, size = 0x4, scoped, tag = 'scoped memory for actor_forward.1']
    %14 = vsyncpa [#allocation3], 0
    %15 = vsyncpa [#allocation5], 0
    // Predicated region
    $region2: #{actor_forward.1} parent=1 // pred_check
      _
    $region3: #{actor_forward.1} parent=1 // pred_check_branch
      %17 = sbr.rel (0) target = $region5
    $region4: #{actor_forward.1} parent=1 // pred_region
      _
    $region5: #{actor_forward.1} parent=1 // pred_fallthru
      _
    // Predicated region
    $region6: #{actor_forward.1} parent=1 // pred_check
      _
    $region7: #{actor_forward.1} parent=1 // pred_check_branch
      %19 = sbr.rel (0) target = $region9
    $region8: #{actor_forward.1} parent=1 // pred_region
      _
    $region9: #{actor_forward.1} parent=1 // pred_fallthru
      _
    // Predicated region
    $region10: #{actor_forward.1} parent=1 // pred_check
      _
    $region11: #{actor_forward.1} parent=1 // pred_check_branch
      %21 = sbr.rel (0) target = $region13
    $region12: #{actor_forward.1} parent=1 // pred_region
      _
    $region13: #{actor_forward.1} parent=1 // pred_fallthru
      _
    // Predicated region
    $region14: #{actor_forward.1} parent=1 // pred_check
      _
    $region15: #{actor_forward.1} parent=1 // pred_check_branch
      %23 = sbr.rel (0) target = $region17
    $region16: #{actor_forward.1} parent=1 // pred_region
      _
    $region17: #{actor_forward.1} parent=1 // pred_fallthru
      _
    // Predicated region
    $region18: #{actor_forward.1} parent=1 // pred_check
      _
    $region19: #{actor_forward.1} parent=1 // pred_check_branch
      %25 = sbr.rel (0) target = $region21
    $region20: #{actor_forward.1} parent=1 // pred_region
      _
    $region21: #{actor_forward.1} parent=1 // pred_fallthru
      _
    // Predicated region
    $region22: #{actor_forward.1} parent=1 // pred_check
      _
    $region23: #{actor_forward.1} parent=1 // pred_check_branch
      %27 = sbr.rel (0) target = $region25
    $region24: #{actor_forward.1} parent=1 // pred_region
      %s29 = ssub.s32 2048, 2048
      %30 = vsyncadd [#allocation3], %s29
      %s31 = sshll.u32 [#allocation2], 4
      %s32 = int_to_ptr.vmem [resolvable:$true] %s31
      %37 = dma.hbm_to_vmem [thread:$0]  %s5, 2048, %s32, [#allocation3], 128, 128, 8
    $region25: #{actor_forward.1} parent=1 // pred_fallthru
      _
    // Predicated region
    $region26: #{actor_forward.1} parent=1 // pred_check
      _
    $region27: #{actor_forward.1} parent=1 // pred_check_branch
      %39 = sbr.rel (0) target = $region29
    $region28: #{actor_forward.1} parent=1 // pred_region
      _
    $region29: #{actor_forward.1} parent=1 // pred_fallthru
      _
    // Predicated region
    $region30: #{actor_forward.1} parent=1 // pred_check
      _
    $region31: #{actor_forward.1} parent=1 // pred_check_branch
      %41 = sbr.rel (0) target = $region33
    $region32: #{actor_forward.1} parent=1 // pred_region
      %s43 = ssub.s32 2048, 2048
      %44 = vsyncadd [#allocation5], %s43
      %s45 = sshll.u32 [#allocation4], 4
      %s46 = int_to_ptr.vmem [resolvable:$true] %s45
      %51 = dma.hbm_to_vmem [thread:$0]  %s7, 2048, %s46, [#allocation5], 128, 128, 8
    $region33: #{actor_forward.1} parent=1 // pred_fallthru
      _
    // Predicated region
    $region34: #{actor_forward.1} parent=1 // pred_check
      _
    $region35: #{actor_forward.1} parent=1 // pred_check_branch
      %53 = sbr.rel (0) target = $region37
    $region36: #{actor_forward.1} parent=1 // pred_region
      _
    $region37: #{actor_forward.1} parent=1 // pred_fallthru
      _
    // Predicated region
    $region38: #{actor_forward.1} parent=1 // pred_check
      _
    $region39: #{actor_forward.1} parent=1 // pred_check_branch
      %55 = sbr.rel (0) target = $region41
    $region40: #{actor_forward.1} parent=1 // pred_region
      %56 = dma.done [#allocation3], 2048
    $region41: #{actor_forward.1} parent=1 // pred_fallthru
      _
    // Predicated region
    $region42: #{actor_forward.1} parent=1 // pred_check
      _
    $region43: #{actor_forward.1} parent=1 // pred_check_branch
      %58 = sbr.rel (0) target = $region45
    $region44: #{actor_forward.1} parent=1 // pred_region
      %59 = dma.done [#allocation5], 2048
    $region45: #{actor_forward.1} parent=1 // pred_fallthru
      _
    %v60 = vld [vmem:[%s0] sm:$0xff]
    %v61 = vld [vmem:[%s0 + $0x8] sm:$0xff]
    %v62 = vld [vmem:[%s0 + $0x10] sm:$0xff]
    %v63 = vld [vmem:[%s0 + $0x18] sm:$0xff]
    %v64 = vld [vmem:[%s0 + $0x20] sm:$0xff]
    %v65 = vld [vmem:[%s0 + $0x28] sm:$0xff]
    %v66 = vld [vmem:[%s0 + $0x30] sm:$0xff]
    %v67 = vld [vmem:[%s0 + $0x38] sm:$0xff]
    %v68 = vld [vmem:[%s0 + $0x40] sm:$0xff]
    %v69 = vld [vmem:[%s0 + $0x48] sm:$0xff]
    %v70 = vld [vmem:[%s0 + $0x50] sm:$0xff]
    %v71 = vld [vmem:[%s0 + $0x58] sm:$0xff]
    %v72 = vld [vmem:[%s0 + $0x60] sm:$0xff]
    %v73 = vld [vmem:[%s0 + $0x68] sm:$0xff]
    %v74 = vld [vmem:[%s0 + $0x70] sm:$0xff]
    %v75 = vld [vmem:[%s0 + $0x78] sm:$0xff]
    %v76 = vld [vmem:[%s1] sm:$0xff]
    %v77 = vld [vmem:[%s2] sm:$0x1]
    %v79 = vlaneseq
    %v80 = vshrl.u32 %v79, 7
    %v81 = vsub.s32 0, %v80
    %v82 = vrot.slane %v77, %v81
    %vm84 = vcmask 64512
    %v86 = vsel %vm84, %v60, 0
    %v89 = vsel %vm84, %v61, 0
    %v92 = vsel %vm84, %v62, 0
    %v95 = vsel %vm84, %v63, 0
    %v98 = vsel %vm84, %v64, 0
    %v101 = vsel %vm84, %v65, 0
    %v104 = vsel %vm84, %v66, 0
    %v107 = vsel %vm84, %v67, 0
    %v110 = vsel %vm84, %v68, 0
    %v113 = vsel %vm84, %v69, 0
    %v116 = vsel %vm84, %v70, 0
    %v119 = vsel %vm84, %v71, 0
    %v122 = vsel %vm84, %v72, 0
    %v125 = vsel %vm84, %v73, 0
    %v128 = vsel %vm84, %v74, 0
    %v131 = vsel %vm84, %v75, 0
    %133 = vmatprep.subr.mxu0 0.0
    %134 = vmatpush1.msra.mxu0 %v76
    %135 = vmatprep.subr.mxu0 0.0
    %136 = vmatpush1.msra.mxu0 0.0
    %137 = vmatprep.subr.mxu0 0.0
    %138 = vmatpush1.msra.mxu0 0.0
    %139 = vmatprep.subr.mxu0 0.0
    %140 = vmatpush1.msra.mxu0 0.0
    %141 = vmatprep.subr.mxu0 0.0
    %142 = vmatpush1.msra.mxu0 0.0
    %143 = vmatprep.subr.mxu0 0.0
    %144 = vmatpush1.msra.mxu0 0.0
    %145 = vmatprep.subr.mxu0 0.0
    %146 = vmatpush1.msra.mxu0 0.0
    %147 = vmatprep.subr.mxu0 0.0
    %148 = vmatpush1.msra.mxu0 0.0
    %149 = vmatprep.subr.mxu0 0.0
    %150 = vmatpush1.msra.mxu0 0.0
    %151 = vmatprep.subr.mxu0 0.0
    %152 = vmatpush1.msra.mxu0 0.0
    %153 = vmatprep.subr.mxu0 0.0
    %154 = vmatpush1.msra.mxu0 0.0
    %155 = vmatprep.subr.mxu0 0.0
    %156 = vmatpush1.msra.mxu0 0.0
    %157 = vmatprep.subr.mxu0 0.0
    %158 = vmatpush1.msra.mxu0 0.0
    %159 = vmatprep.subr.mxu0 0.0
    %160 = vmatpush1.msra.mxu0 0.0
    %161 = vmatprep.subr.mxu0 0.0
    %162 = vmatpush1.msra.mxu0 0.0
    %163 = vmatprep.subr.mxu0 0.0
    %164 = vmatpush1.msra.mxu0 0.0
    %165 = vmatprep.subr.mxu0 0.0
    %166 = vmatpush1.msra.mxu0 0.0
    %167 = vmatprep.subr.mxu0 0.0
    %168 = vmatpush1.msra.mxu0 0.0
    %169 = vmatprep.subr.mxu0 0.0
    %170 = vmatpush1.msra.mxu0 0.0
    %171 = vmatprep.subr.mxu0 0.0
    %172 = vmatpush1.msra.mxu0 0.0
    %173 = vmatprep.subr.mxu0 0.0
    %174 = vmatpush1.msra.mxu0 0.0
    %175 = vmatprep.subr.mxu0 0.0
    %176 = vmatpush1.msra.mxu0 0.0
    %177 = vmatprep.subr.mxu0 0.0
    %178 = vmatpush1.msra.mxu0 0.0
    %179 = vmatprep.subr.mxu0 0.0
    %180 = vmatpush1.msra.mxu0 0.0
    %181 = vmatprep.subr.mxu0 0.0
    %182 = vmatpush1.msra.mxu0 0.0
    %183 = vmatprep.subr.mxu0 0.0
    %184 = vmatpush1.msra.mxu0 0.0
    %185 = vmatprep.subr.mxu0 0.0
    %186 = vmatpush1.msra.mxu0 0.0
    %187 = vmatprep.subr.mxu0 0.0
    %188 = vmatpush1.msra.mxu0 0.0
    %189 = vmatprep.subr.mxu0 0.0
    %190 = vmatpush1.msra.mxu0 0.0
    %191 = vmatprep.subr.mxu0 0.0
    %192 = vmatpush1.msra.mxu0 0.0
    %193 = vmatprep.subr.mxu0 0.0
    %194 = vmatpush1.msra.mxu0 0.0
    %195 = vmatprep.subr.mxu0 0.0
    %196 = vmatpush1.msra.mxu0 0.0
    %197 = vmatprep.mubr.f32.mxu0 0.0
    %198 = vmatmul.mubr.f32.gmra.mrb[0].mxu0 %v86
    %v199 = vpop.f32.mrb[0].mxu0
    %v200 = vadd.f32 %v82, %v199
    %v201 = vpop.f32.mrb[0].mxu0
    %202 = vmatprep.mubr.f32.mxu0 0.0
    %203 = vmatmul.mubr.f32.gmra.mrb[0].mxu0 %v89
    %v204 = vpop.f32.mrb[0].mxu0
    %v205 = vadd.f32 %v82, %v204
    %v206 = vpop.f32.mrb[0].mxu0
    %207 = vmatprep.mubr.f32.mxu0 0.0
    %208 = vmatmul.mubr.f32.gmra.mrb[0].mxu0 %v92
    %v209 = vpop.f32.mrb[0].mxu0
    %v210 = vadd.f32 %v82, %v209
    %v211 = vpop.f32.mrb[0].mxu0
    %212 = vmatprep.mubr.f32.mxu0 0.0
    %213 = vmatmul.mubr.f32.gmra.mrb[0].mxu0 %v95
    %v214 = vpop.f32.mrb[0].mxu0
    %v215 = vadd.f32 %v82, %v214
    %v216 = vpop.f32.mrb[0].mxu0
    %217 = vmatprep.mubr.f32.mxu0 0.0
    %218 = vmatmul.mubr.f32.gmra.mrb[0].mxu0 %v98
    %v219 = vpop.f32.mrb[0].mxu0
    %v220 = vadd.f32 %v82, %v219
    %v221 = vpop.f32.mrb[0].mxu0
    %222 = vmatprep.mubr.f32.mxu0 0.0
    %223 = vmatmul.mubr.f32.gmra.mrb[0].mxu0 %v101
    %v224 = vpop.f32.mrb[0].mxu0
    %v225 = vadd.f32 %v82, %v224
    %v226 = vpop.f32.mrb[0].mxu0
    %227 = vmatprep.mubr.f32.mxu0 0.0
    %228 = vmatmul.mubr.f32.gmra.mrb[0].mxu0 %v104
    %v229 = vpop.f32.mrb[0].mxu0
    %v230 = vadd.f32 %v82, %v229
    %v231 = vpop.f32.mrb[0].mxu0
    %232 = vmatprep.mubr.f32.mxu0 0.0
    %233 = vmatmul.mubr.f32.gmra.mrb[0].mxu0 %v107
    %v234 = vpop.f32.mrb[0].mxu0
    %v235 = vadd.f32 %v82, %v234
    %v236 = vpop.f32.mrb[0].mxu0
    %237 = vmatprep.mubr.f32.mxu0 0.0
    %238 = vmatmul.mubr.f32.gmra.mrb[0].mxu0 %v110
    %v239 = vpop.f32.mrb[0].mxu0
    %v240 = vadd.f32 %v82, %v239
    %v241 = vpop.f32.mrb[0].mxu0
    %242 = vmatprep.mubr.f32.mxu0 0.0
    %243 = vmatmul.mubr.f32.gmra.mrb[0].mxu0 %v113
    %v244 = vpop.f32.mrb[0].mxu0
    %v245 = vadd.f32 %v82, %v244
    %v246 = vpop.f32.mrb[0].mxu0
    %247 = vmatprep.mubr.f32.mxu0 0.0
    %248 = vmatmul.mubr.f32.gmra.mrb[0].mxu0 %v116
    %v249 = vpop.f32.mrb[0].mxu0
    %v250 = vadd.f32 %v82, %v249
    %v251 = vpop.f32.mrb[0].mxu0
    %252 = vmatprep.mubr.f32.mxu0 0.0
    %253 = vmatmul.mubr.f32.gmra.mrb[0].mxu0 %v119
    %v254 = vpop.f32.mrb[0].mxu0
    %v255 = vadd.f32 %v82, %v254
    %v256 = vpop.f32.mrb[0].mxu0
    %257 = vmatprep.mubr.f32.mxu0 0.0
    %258 = vmatmul.mubr.f32.gmra.mrb[0].mxu0 %v122
    %v259 = vpop.f32.mrb[0].mxu0
    %v260 = vadd.f32 %v82, %v259
    %v261 = vpop.f32.mrb[0].mxu0
    %262 = vmatprep.mubr.f32.mxu0 0.0
    %263 = vmatmul.mubr.f32.gmra.mrb[0].mxu0 %v125
    %v264 = vpop.f32.mrb[0].mxu0
    %v265 = vadd.f32 %v82, %v264
    %v266 = vpop.f32.mrb[0].mxu0
    %267 = vmatprep.mubr.f32.mxu0 0.0
    %268 = vmatmul.mubr.f32.gmra.mrb[0].mxu0 %v128
    %v269 = vpop.f32.mrb[0].mxu0
    %v270 = vadd.f32 %v82, %v269
    %v271 = vpop.f32.mrb[0].mxu0
    %272 = vmatprep.mubr.f32.mxu0 0.0
    %273 = vmatmul.mubr.f32.gmra.mrb[0].mxu0 %v131
    %v274 = vpop.f32.mrb[0].mxu0
    %v275 = vadd.f32 %v82, %v274
    %v276 = vpop.f32.mrb[0].mxu0
    %277 = vdwg.mxu0
    %v278 = vmax.f32 %v200, 0.0
    %v279 = vmax.f32 %v205, 0.0
    %v280 = vmax.f32 %v210, 0.0
    %v281 = vmax.f32 %v215, 0.0
    %v282 = vmax.f32 %v220, 0.0
    %v283 = vmax.f32 %v225, 0.0
    %v284 = vmax.f32 %v230, 0.0
    %v285 = vmax.f32 %v235, 0.0
    %v286 = vmax.f32 %v240, 0.0
    %v287 = vmax.f32 %v245, 0.0
    %v288 = vmax.f32 %v250, 0.0
    %v289 = vmax.f32 %v255, 0.0
    %v290 = vmax.f32 %v260, 0.0
    %v291 = vmax.f32 %v265, 0.0
    %v292 = vmax.f32 %v270, 0.0
    %v293 = vmax.f32 %v275, 0.0
    %v294 = vld [vmem:[%s3] sm:$0xff]
    %v295 = vld [vmem:[%s3 + $0x8] sm:$0xff]
    %v296 = vld [vmem:[%s3 + $0x10] sm:$0xff]
    %v297 = vld [vmem:[%s3 + $0x18] sm:$0xff]
    %v298 = vld [vmem:[%s3 + $0x20] sm:$0xff]
    %v299 = vld [vmem:[%s3 + $0x28] sm:$0xff]
    %v300 = vld [vmem:[%s3 + $0x30] sm:$0xff]
    %v301 = vld [vmem:[%s3 + $0x38] sm:$0xff]
    %v302 = vld [vmem:[%s3 + $0x40] sm:$0xff]
    %v303 = vld [vmem:[%s3 + $0x48] sm:$0xff]
    %v304 = vld [vmem:[%s3 + $0x50] sm:$0xff]
    %v305 = vld [vmem:[%s3 + $0x58] sm:$0xff]
    %v306 = vld [vmem:[%s3 + $0x60] sm:$0xff]
    %v307 = vld [vmem:[%s3 + $0x68] sm:$0xff]
    %v308 = vld [vmem:[%s3 + $0x70] sm:$0xff]
    %v309 = vld [vmem:[%s3 + $0x78] sm:$0xff]
    %v310 = vld [vmem:[%s4] sm:$0x1]
    %v312 = vlaneseq
    %v313 = vshrl.u32 %v312, 7
    %v314 = vsub.s32 0, %v313
    %v315 = vrot.slane %v310, %v314
    %317 = vmatprep.subr.mxu0 0.0
    %318 = vmatpush1.msra.mxu0 %v294
    %319 = vmatprep.subr.mxu0 0.0
    %320 = vmatpush1.msra.mxu0 %v295
    %321 = vmatprep.subr.mxu0 0.0
    %322 = vmatpush1.msra.mxu0 %v296
    %323 = vmatprep.subr.mxu0 0.0
    %324 = vmatpush1.msra.mxu0 %v297
    %325 = vmatprep.subr.mxu0 0.0
    %326 = vmatpush1.msra.mxu0 %v298
    %327 = vmatprep.subr.mxu0 0.0
    %328 = vmatpush1.msra.mxu0 %v299
    %329 = vmatprep.subr.mxu0 0.0
    %330 = vmatpush1.msra.mxu0 %v300
    %331 = vmatprep.subr.mxu0 0.0
    %332 = vmatpush1.msra.mxu0 %v301
    %333 = vmatprep.subr.mxu0 0.0
    %334 = vmatpush1.msra.mxu0 %v302
    %335 = vmatprep.subr.mxu0 0.0
    %336 = vmatpush1.msra.mxu0 %v303
    %337 = vmatprep.subr.mxu0 0.0
    %338 = vmatpush1.msra.mxu0 %v304
    %339 = vmatprep.subr.mxu0 0.0
    %340 = vmatpush1.msra.mxu0 %v305
    %341 = vmatprep.subr.mxu0 0.0
    %342 = vmatpush1.msra.mxu0 %v306
    %343 = vmatprep.subr.mxu0 0.0
    %344 = vmatpush1.msra.mxu0 %v307
    %345 = vmatprep.subr.mxu0 0.0
    %346 = vmatpush1.msra.mxu0 %v308
    %347 = vmatprep.subr.mxu0 0.0
    %348 = vmatpush1.msra.mxu0 %v309
    %349 = vmatprep.subr.mxu0 0.0
    %350 = vmatpush1.msra.mxu0 0.0
    %351 = vmatprep.subr.mxu0 0.0
    %352 = vmatpush1.msra.mxu0 0.0
    %353 = vmatprep.subr.mxu0 0.0
    %354 = vmatpush1.msra.mxu0 0.0
    %355 = vmatprep.subr.mxu0 0.0
    %356 = vmatpush1.msra.mxu0 0.0
    %357 = vmatprep.subr.mxu0 0.0
    %358 = vmatpush1.msra.mxu0 0.0
    %359 = vmatprep.subr.mxu0 0.0
    %360 = vmatpush1.msra.mxu0 0.0
    %361 = vmatprep.subr.mxu0 0.0
    %362 = vmatpush1.msra.mxu0 0.0
    %363 = vmatprep.subr.mxu0 0.0
    %364 = vmatpush1.msra.mxu0 0.0
    %365 = vmatprep.subr.mxu0 0.0
    %366 = vmatpush1.msra.mxu0 0.0
    %367 = vmatprep.subr.mxu0 0.0
    %368 = vmatpush1.msra.mxu0 0.0
    %369 = vmatprep.subr.mxu0 0.0
    %370 = vmatpush1.msra.mxu0 0.0
    %371 = vmatprep.subr.mxu0 0.0
    %372 = vmatpush1.msra.mxu0 0.0
    %373 = vmatprep.subr.mxu0 0.0
    %374 = vmatpush1.msra.mxu0 0.0
    %375 = vmatprep.subr.mxu0 0.0
    %376 = vmatpush1.msra.mxu0 0.0
    %377 = vmatprep.subr.mxu0 0.0
    %378 = vmatpush1.msra.mxu0 0.0
    %379 = vmatprep.subr.mxu0 0.0
    %380 = vmatpush1.msra.mxu0 0.0
    %381 = vmatprep.mubr.f32.mxu0 0.0
    %382 = vmatmul.mubr.f32.gmra.mrb[0].mxu0 %v278
    %v383 = vpop.f32.mrb[0].mxu0
    %v384 = vadd.f32 %v315, %v383
    %v385 = vpop.f32.mrb[0].mxu0
    %386 = vmatprep.mubr.f32.mxu0 0.0
    %387 = vmatmul.mubr.f32.gmra.mrb[0].mxu0 %v279
    %v388 = vpop.f32.mrb[0].mxu0
    %v389 = vadd.f32 %v315, %v388
    %v390 = vpop.f32.mrb[0].mxu0
    %391 = vmatprep.mubr.f32.mxu0 0.0
    %392 = vmatmul.mubr.f32.gmra.mrb[0].mxu0 %v280
    %v393 = vpop.f32.mrb[0].mxu0
    %v394 = vadd.f32 %v315, %v393
    %v395 = vpop.f32.mrb[0].mxu0
    %396 = vmatprep.mubr.f32.mxu0 0.0
    %397 = vmatmul.mubr.f32.gmra.mrb[0].mxu0 %v281
    %v398 = vpop.f32.mrb[0].mxu0
    %v399 = vadd.f32 %v315, %v398
    %v400 = vpop.f32.mrb[0].mxu0
    %401 = vmatprep.mubr.f32.mxu0 0.0
    %402 = vmatmul.mubr.f32.gmra.mrb[0].mxu0 %v282
    %v403 = vpop.f32.mrb[0].mxu0
    %v404 = vadd.f32 %v315, %v403
    %v405 = vpop.f32.mrb[0].mxu0
    %406 = vmatprep.mubr.f32.mxu0 0.0
    %407 = vmatmul.mubr.f32.gmra.mrb[0].mxu0 %v283
    %v408 = vpop.f32.mrb[0].mxu0
    %v409 = vadd.f32 %v315, %v408
    %v410 = vpop.f32.mrb[0].mxu0
    %411 = vmatprep.mubr.f32.mxu0 0.0
    %412 = vmatmul.mubr.f32.gmra.mrb[0].mxu0 %v284
    %v413 = vpop.f32.mrb[0].mxu0
    %v414 = vadd.f32 %v315, %v413
    %v415 = vpop.f32.mrb[0].mxu0
    %416 = vmatprep.mubr.f32.mxu0 0.0
    %417 = vmatmul.mubr.f32.gmra.mrb[0].mxu0 %v285
    %v418 = vpop.f32.mrb[0].mxu0
    %v419 = vadd.f32 %v315, %v418
    %v420 = vpop.f32.mrb[0].mxu0
    %421 = vmatprep.mubr.f32.mxu0 0.0
    %422 = vmatmul.mubr.f32.gmra.mrb[0].mxu0 %v286
    %v423 = vpop.f32.mrb[0].mxu0
    %v424 = vadd.f32 %v315, %v423
    %v425 = vpop.f32.mrb[0].mxu0
    %426 = vmatprep.mubr.f32.mxu0 0.0
    %427 = vmatmul.mubr.f32.gmra.mrb[0].mxu0 %v287
    %v428 = vpop.f32.mrb[0].mxu0
    %v429 = vadd.f32 %v315, %v428
    %v430 = vpop.f32.mrb[0].mxu0
    %431 = vmatprep.mubr.f32.mxu0 0.0
    %432 = vmatmul.mubr.f32.gmra.mrb[0].mxu0 %v288
    %v433 = vpop.f32.mrb[0].mxu0
    %v434 = vadd.f32 %v315, %v433
    %v435 = vpop.f32.mrb[0].mxu0
    %436 = vmatprep.mubr.f32.mxu0 0.0
    %437 = vmatmul.mubr.f32.gmra.mrb[0].mxu0 %v289
    %v438 = vpop.f32.mrb[0].mxu0
    %v439 = vadd.f32 %v315, %v438
    %v440 = vpop.f32.mrb[0].mxu0
    %441 = vmatprep.mubr.f32.mxu0 0.0
    %442 = vmatmul.mubr.f32.gmra.mrb[0].mxu0 %v290
    %v443 = vpop.f32.mrb[0].mxu0
    %v444 = vadd.f32 %v315, %v443
    %v445 = vpop.f32.mrb[0].mxu0
    %446 = vmatprep.mubr.f32.mxu0 0.0
    %447 = vmatmul.mubr.f32.gmra.mrb[0].mxu0 %v291
    %v448 = vpop.f32.mrb[0].mxu0
    %v449 = vadd.f32 %v315, %v448
    %v450 = vpop.f32.mrb[0].mxu0
    %451 = vmatprep.mubr.f32.mxu0 0.0
    %452 = vmatmul.mubr.f32.gmra.mrb[0].mxu0 %v292
    %v453 = vpop.f32.mrb[0].mxu0
    %v454 = vadd.f32 %v315, %v453
    %v455 = vpop.f32.mrb[0].mxu0
    %456 = vmatprep.mubr.f32.mxu0 0.0
    %457 = vmatmul.mubr.f32.gmra.mrb[0].mxu0 %v293
    %v458 = vpop.f32.mrb[0].mxu0
    %v459 = vadd.f32 %v315, %v458
    %v460 = vpop.f32.mrb[0].mxu0
    %461 = vdwg.mxu0
    %v462 = vmax.f32 %v384, 0.0
    %v463 = vmax.f32 %v389, 0.0
    %v464 = vmax.f32 %v394, 0.0
    %v465 = vmax.f32 %v399, 0.0
    %v466 = vmax.f32 %v404, 0.0
    %v467 = vmax.f32 %v409, 0.0
    %v468 = vmax.f32 %v414, 0.0
    %v469 = vmax.f32 %v419, 0.0
    %v470 = vmax.f32 %v424, 0.0
    %v471 = vmax.f32 %v429, 0.0
    %v472 = vmax.f32 %v434, 0.0
    %v473 = vmax.f32 %v439, 0.0
    %v474 = vmax.f32 %v444, 0.0
    %v475 = vmax.f32 %v449, 0.0
    %v476 = vmax.f32 %v454, 0.0
    %v477 = vmax.f32 %v459, 0.0
    %v478 = vld [vmem:[#allocation2] sm:$0xff]
    %v479 = vld [vmem:[#allocation2 + $0x8] sm:$0xff]
    %v480 = vld [vmem:[#allocation2 + $0x10] sm:$0xff]
    %v481 = vld [vmem:[#allocation2 + $0x18] sm:$0xff]
    %v482 = vld [vmem:[#allocation2 + $0x20] sm:$0xff]
    %v483 = vld [vmem:[#allocation2 + $0x28] sm:$0xff]
    %v484 = vld [vmem:[#allocation2 + $0x30] sm:$0xff]
    %v485 = vld [vmem:[#allocation2 + $0x38] sm:$0xff]
    %v486 = vld [vmem:[#allocation2 + $0x40] sm:$0xff]
    %v487 = vld [vmem:[#allocation2 + $0x48] sm:$0xff]
    %v488 = vld [vmem:[#allocation2 + $0x50] sm:$0xff]
    %v489 = vld [vmem:[#allocation2 + $0x58] sm:$0xff]
    %v490 = vld [vmem:[#allocation2 + $0x60] sm:$0xff]
    %v491 = vld [vmem:[#allocation2 + $0x68] sm:$0xff]
    %v492 = vld [vmem:[#allocation2 + $0x70] sm:$0xff]
    %v493 = vld [vmem:[#allocation2 + $0x78] sm:$0xff]
    %v494 = vld [vmem:[%s6] sm:$0x1]
    %v496 = vlaneseq
    %v497 = vshrl.u32 %v496, 7
    %v498 = vsub.s32 0, %v497
    %v499 = vrot.slane %v494, %v498
    %501 = vmatprep.subr.mxu0 0.0
    %502 = vmatpush1.msra.mxu0 %v478
    %503 = vmatprep.subr.mxu0 0.0
    %504 = vmatpush1.msra.mxu0 %v479
    %505 = vmatprep.subr.mxu0 0.0
    %506 = vmatpush1.msra.mxu0 %v480
    %507 = vmatprep.subr.mxu0 0.0
    %508 = vmatpush1.msra.mxu0 %v481
    %509 = vmatprep.subr.mxu0 0.0
    %510 = vmatpush1.msra.mxu0 %v482
    %511 = vmatprep.subr.mxu0 0.0
    %512 = vmatpush1.msra.mxu0 %v483
    %513 = vmatprep.subr.mxu0 0.0
    %514 = vmatpush1.msra.mxu0 %v484
    %515 = vmatprep.subr.mxu0 0.0
    %516 = vmatpush1.msra.mxu0 %v485
    %517 = vmatprep.subr.mxu0 0.0
    %518 = vmatpush1.msra.mxu0 %v486
    %519 = vmatprep.subr.mxu0 0.0
    %520 = vmatpush1.msra.mxu0 %v487
    %521 = vmatprep.subr.mxu0 0.0
    %522 = vmatpush1.msra.mxu0 %v488
    %523 = vmatprep.subr.mxu0 0.0
    %524 = vmatpush1.msra.mxu0 %v489
    %525 = vmatprep.subr.mxu0 0.0
    %526 = vmatpush1.msra.mxu0 %v490
    %527 = vmatprep.subr.mxu0 0.0
    %528 = vmatpush1.msra.mxu0 %v491
    %529 = vmatprep.subr.mxu0 0.0
    %530 = vmatpush1.msra.mxu0 %v492
    %531 = vmatprep.subr.mxu0 0.0
    %532 = vmatpush1.msra.mxu0 %v493
    %533 = vmatprep.subr.mxu0 0.0
    %534 = vmatpush1.msra.mxu0 0.0
    %535 = vmatprep.subr.mxu0 0.0
    %536 = vmatpush1.msra.mxu0 0.0
    %537 = vmatprep.subr.mxu0 0.0
    %538 = vmatpush1.msra.mxu0 0.0
    %539 = vmatprep.subr.mxu0 0.0
    %540 = vmatpush1.msra.mxu0 0.0
    %541 = vmatprep.subr.mxu0 0.0
    %542 = vmatpush1.msra.mxu0 0.0
    %543 = vmatprep.subr.mxu0 0.0
    %544 = vmatpush1.msra.mxu0 0.0
    %545 = vmatprep.subr.mxu0 0.0
    %546 = vmatpush1.msra.mxu0 0.0
    %547 = vmatprep.subr.mxu0 0.0
    %548 = vmatpush1.msra.mxu0 0.0
    %549 = vmatprep.subr.mxu0 0.0
    %550 = vmatpush1.msra.mxu0 0.0
    %551 = vmatprep.subr.mxu0 0.0
    %552 = vmatpush1.msra.mxu0 0.0
    %553 = vmatprep.subr.mxu0 0.0
    %554 = vmatpush1.msra.mxu0 0.0
    %555 = vmatprep.subr.mxu0 0.0
    %556 = vmatpush1.msra.mxu0 0.0
    %557 = vmatprep.subr.mxu0 0.0
    %558 = vmatpush1.msra.mxu0 0.0
    %559 = vmatprep.subr.mxu0 0.0
    %560 = vmatpush1.msra.mxu0 0.0
    %561 = vmatprep.subr.mxu0 0.0
    %562 = vmatpush1.msra.mxu0 0.0
    %563 = vmatprep.subr.mxu0 0.0
    %564 = vmatpush1.msra.mxu0 0.0
    %565 = vmatprep.mubr.f32.mxu0 0.0
    %566 = vmatmul.mubr.f32.gmra.mrb[0].mxu0 %v462
    %v567 = vpop.f32.mrb[0].mxu0
    %v568 = vadd.f32 %v499, %v567
    %v569 = vpop.f32.mrb[0].mxu0
    %570 = vmatprep.mubr.f32.mxu0 0.0
    %571 = vmatmul.mubr.f32.gmra.mrb[0].mxu0 %v463
    %v572 = vpop.f32.mrb[0].mxu0
    %v573 = vadd.f32 %v499, %v572
    %v574 = vpop.f32.mrb[0].mxu0
    %575 = vmatprep.mubr.f32.mxu0 0.0
    %576 = vmatmul.mubr.f32.gmra.mrb[0].mxu0 %v464
    %v577 = vpop.f32.mrb[0].mxu0
    %v578 = vadd.f32 %v499, %v577
    %v579 = vpop.f32.mrb[0].mxu0
    %580 = vmatprep.mubr.f32.mxu0 0.0
    %581 = vmatmul.mubr.f32.gmra.mrb[0].mxu0 %v465
    %v582 = vpop.f32.mrb[0].mxu0
    %v583 = vadd.f32 %v499, %v582
    %v584 = vpop.f32.mrb[0].mxu0
    %585 = vmatprep.mubr.f32.mxu0 0.0
    %586 = vmatmul.mubr.f32.gmra.mrb[0].mxu0 %v466
    %v587 = vpop.f32.mrb[0].mxu0
    %v588 = vadd.f32 %v499, %v587
    %v589 = vpop.f32.mrb[0].mxu0
    %590 = vmatprep.mubr.f32.mxu0 0.0
    %591 = vmatmul.mubr.f32.gmra.mrb[0].mxu0 %v467
    %v592 = vpop.f32.mrb[0].mxu0
    %v593 = vadd.f32 %v499, %v592
    %v594 = vpop.f32.mrb[0].mxu0
    %595 = vmatprep.mubr.f32.mxu0 0.0
    %596 = vmatmul.mubr.f32.gmra.mrb[0].mxu0 %v468
    %v597 = vpop.f32.mrb[0].mxu0
    %v598 = vadd.f32 %v499, %v597
    %v599 = vpop.f32.mrb[0].mxu0
    %600 = vmatprep.mubr.f32.mxu0 0.0
    %601 = vmatmul.mubr.f32.gmra.mrb[0].mxu0 %v469
    %v602 = vpop.f32.mrb[0].mxu0
    %v603 = vadd.f32 %v499, %v602
    %v604 = vpop.f32.mrb[0].mxu0
    %605 = vmatprep.mubr.f32.mxu0 0.0
    %606 = vmatmul.mubr.f32.gmra.mrb[0].mxu0 %v470
    %v607 = vpop.f32.mrb[0].mxu0
    %v608 = vadd.f32 %v499, %v607
    %v609 = vpop.f32.mrb[0].mxu0
    %610 = vmatprep.mubr.f32.mxu0 0.0
    %611 = vmatmul.mubr.f32.gmra.mrb[0].mxu0 %v471
    %v612 = vpop.f32.mrb[0].mxu0
    %v613 = vadd.f32 %v499, %v612
    %v614 = vpop.f32.mrb[0].mxu0
    %615 = vmatprep.mubr.f32.mxu0 0.0
    %616 = vmatmul.mubr.f32.gmra.mrb[0].mxu0 %v472
    %v617 = vpop.f32.mrb[0].mxu0
    %v618 = vadd.f32 %v499, %v617
    %v619 = vpop.f32.mrb[0].mxu0
    %620 = vmatprep.mubr.f32.mxu0 0.0
    %621 = vmatmul.mubr.f32.gmra.mrb[0].mxu0 %v473
    %v622 = vpop.f32.mrb[0].mxu0
    %v623 = vadd.f32 %v499, %v622
    %v624 = vpop.f32.mrb[0].mxu0
    %625 = vmatprep.mubr.f32.mxu0 0.0
    %626 = vmatmul.mubr.f32.gmra.mrb[0].mxu0 %v474
    %v627 = vpop.f32.mrb[0].mxu0
    %v628 = vadd.f32 %v499, %v627
    %v629 = vpop.f32.mrb[0].mxu0
    %630 = vmatprep.mubr.f32.mxu0 0.0
    %631 = vmatmul.mubr.f32.gmra.mrb[0].mxu0 %v475
    %v632 = vpop.f32.mrb[0].mxu0
    %v633 = vadd.f32 %v499, %v632
    %v634 = vpop.f32.mrb[0].mxu0
    %635 = vmatprep.mubr.f32.mxu0 0.0
    %636 = vmatmul.mubr.f32.gmra.mrb[0].mxu0 %v476
    %v637 = vpop.f32.mrb[0].mxu0
    %v638 = vadd.f32 %v499, %v637
    %v639 = vpop.f32.mrb[0].mxu0
    %640 = vmatprep.mubr.f32.mxu0 0.0
    %641 = vmatmul.mubr.f32.gmra.mrb[0].mxu0 %v477
    %v642 = vpop.f32.mrb[0].mxu0
    %v643 = vadd.f32 %v499, %v642
    %v644 = vpop.f32.mrb[0].mxu0
    %645 = vdwg.mxu0
    %v646 = vmax.f32 %v568, 0.0
    %v647 = vmax.f32 %v573, 0.0
    %v648 = vmax.f32 %v578, 0.0
    %v649 = vmax.f32 %v583, 0.0
    %v650 = vmax.f32 %v588, 0.0
    %v651 = vmax.f32 %v593, 0.0
    %v652 = vmax.f32 %v598, 0.0
    %v653 = vmax.f32 %v603, 0.0
    %v654 = vmax.f32 %v608, 0.0
    %v655 = vmax.f32 %v613, 0.0
    %v656 = vmax.f32 %v618, 0.0
    %v657 = vmax.f32 %v623, 0.0
    %v658 = vmax.f32 %v628, 0.0
    %v659 = vmax.f32 %v633, 0.0
    %v660 = vmax.f32 %v638, 0.0
    %v661 = vmax.f32 %v643, 0.0
    %v662 = vld [vmem:[#allocation4] sm:$0xff]
    %v663 = vld [vmem:[#allocation4 + $0x8] sm:$0xff]
    %v664 = vld [vmem:[#allocation4 + $0x10] sm:$0xff]
    %v665 = vld [vmem:[#allocation4 + $0x18] sm:$0xff]
    %v666 = vld [vmem:[#allocation4 + $0x20] sm:$0xff]
    %v667 = vld [vmem:[#allocation4 + $0x28] sm:$0xff]
    %v668 = vld [vmem:[#allocation4 + $0x30] sm:$0xff]
    %v669 = vld [vmem:[#allocation4 + $0x38] sm:$0xff]
    %v670 = vld [vmem:[#allocation4 + $0x40] sm:$0xff]
    %v671 = vld [vmem:[#allocation4 + $0x48] sm:$0xff]
    %v672 = vld [vmem:[#allocation4 + $0x50] sm:$0xff]
    %v673 = vld [vmem:[#allocation4 + $0x58] sm:$0xff]
    %v674 = vld [vmem:[#allocation4 + $0x60] sm:$0xff]
    %v675 = vld [vmem:[#allocation4 + $0x68] sm:$0xff]
    %v676 = vld [vmem:[#allocation4 + $0x70] sm:$0xff]
    %v677 = vld [vmem:[#allocation4 + $0x78] sm:$0xff]
    %v678 = vld [vmem:[%s8] sm:$0x1]
    %v680 = vlaneseq
    %v681 = vshrl.u32 %v680, 7
    %v682 = vsub.s32 0, %v681
    %v683 = vrot.slane %v678, %v682
    %685 = vmatprep.subr.mxu0 0.0
    %686 = vmatpush1.msra.mxu0 %v662
    %687 = vmatprep.subr.mxu0 0.0
    %688 = vmatpush1.msra.mxu0 %v663
    %689 = vmatprep.subr.mxu0 0.0
    %690 = vmatpush1.msra.mxu0 %v664
    %691 = vmatprep.subr.mxu0 0.0
    %692 = vmatpush1.msra.mxu0 %v665
    %693 = vmatprep.subr.mxu0 0.0
    %694 = vmatpush1.msra.mxu0 %v666
    %695 = vmatprep.subr.mxu0 0.0
    %696 = vmatpush1.msra.mxu0 %v667
    %697 = vmatprep.subr.mxu0 0.0
    %698 = vmatpush1.msra.mxu0 %v668
    %699 = vmatprep.subr.mxu0 0.0
    %700 = vmatpush1.msra.mxu0 %v669
    %701 = vmatprep.subr.mxu0 0.0
    %702 = vmatpush1.msra.mxu0 %v670
    %703 = vmatprep.subr.mxu0 0.0
    %704 = vmatpush1.msra.mxu0 %v671
    %705 = vmatprep.subr.mxu0 0.0
    %706 = vmatpush1.msra.mxu0 %v672
    %707 = vmatprep.subr.mxu0 0.0
    %708 = vmatpush1.msra.mxu0 %v673
    %709 = vmatprep.subr.mxu0 0.0
    %710 = vmatpush1.msra.mxu0 %v674
    %711 = vmatprep.subr.mxu0 0.0
    %712 = vmatpush1.msra.mxu0 %v675
    %713 = vmatprep.subr.mxu0 0.0
    %714 = vmatpush1.msra.mxu0 %v676
    %715 = vmatprep.subr.mxu0 0.0
    %716 = vmatpush1.msra.mxu0 %v677
    %717 = vmatprep.subr.mxu0 0.0
    %718 = vmatpush1.msra.mxu0 0.0
    %719 = vmatprep.subr.mxu0 0.0
    %720 = vmatpush1.msra.mxu0 0.0
    %721 = vmatprep.subr.mxu0 0.0
    %722 = vmatpush1.msra.mxu0 0.0
    %723 = vmatprep.subr.mxu0 0.0
    %724 = vmatpush1.msra.mxu0 0.0
    %725 = vmatprep.subr.mxu0 0.0
    %726 = vmatpush1.msra.mxu0 0.0
    %727 = vmatprep.subr.mxu0 0.0
    %728 = vmatpush1.msra.mxu0 0.0
    %729 = vmatprep.subr.mxu0 0.0
    %730 = vmatpush1.msra.mxu0 0.0
    %731 = vmatprep.subr.mxu0 0.0
    %732 = vmatpush1.msra.mxu0 0.0
    %733 = vmatprep.subr.mxu0 0.0
    %734 = vmatpush1.msra.mxu0 0.0
    %735 = vmatprep.subr.mxu0 0.0
    %736 = vmatpush1.msra.mxu0 0.0
    %737 = vmatprep.subr.mxu0 0.0
    %738 = vmatpush1.msra.mxu0 0.0
    %739 = vmatprep.subr.mxu0 0.0
    %740 = vmatpush1.msra.mxu0 0.0
    %741 = vmatprep.subr.mxu0 0.0
    %742 = vmatpush1.msra.mxu0 0.0
    %743 = vmatprep.subr.mxu0 0.0
    %744 = vmatpush1.msra.mxu0 0.0
    %745 = vmatprep.subr.mxu0 0.0
    %746 = vmatpush1.msra.mxu0 0.0
    %747 = vmatprep.subr.mxu0 0.0
    %748 = vmatpush1.msra.mxu0 0.0
    %749 = vmatprep.mubr.f32.mxu0 0.0
    %750 = vmatmul.mubr.f32.gmra.mrb[0].mxu0 %v646
    %v751 = vpop.f32.mrb[0].mxu0
    %v752 = vadd.f32 %v683, %v751
    %v753 = vpop.f32.mrb[0].mxu0
    %754 = vmatprep.mubr.f32.mxu0 0.0
    %755 = vmatmul.mubr.f32.gmra.mrb[0].mxu0 %v647
    %v756 = vpop.f32.mrb[0].mxu0
    %v757 = vadd.f32 %v683, %v756
    %v758 = vpop.f32.mrb[0].mxu0
    %759 = vmatprep.mubr.f32.mxu0 0.0
    %760 = vmatmul.mubr.f32.gmra.mrb[0].mxu0 %v648
    %v761 = vpop.f32.mrb[0].mxu0
    %v762 = vadd.f32 %v683, %v761
    %v763 = vpop.f32.mrb[0].mxu0
    %764 = vmatprep.mubr.f32.mxu0 0.0
    %765 = vmatmul.mubr.f32.gmra.mrb[0].mxu0 %v649
    %v766 = vpop.f32.mrb[0].mxu0
    %v767 = vadd.f32 %v683, %v766
    %v768 = vpop.f32.mrb[0].mxu0
    %769 = vmatprep.mubr.f32.mxu0 0.0
    %770 = vmatmul.mubr.f32.gmra.mrb[0].mxu0 %v650
    %v771 = vpop.f32.mrb[0].mxu0
    %v772 = vadd.f32 %v683, %v771
    %v773 = vpop.f32.mrb[0].mxu0
    %774 = vmatprep.mubr.f32.mxu0 0.0
    %775 = vmatmul.mubr.f32.gmra.mrb[0].mxu0 %v651
    %v776 = vpop.f32.mrb[0].mxu0
    %v777 = vadd.f32 %v683, %v776
    %v778 = vpop.f32.mrb[0].mxu0
    %779 = vmatprep.mubr.f32.mxu0 0.0
    %780 = vmatmul.mubr.f32.gmra.mrb[0].mxu0 %v652
    %v781 = vpop.f32.mrb[0].mxu0
    %v782 = vadd.f32 %v683, %v781
    %v783 = vpop.f32.mrb[0].mxu0
    %784 = vmatprep.mubr.f32.mxu0 0.0
    %785 = vmatmul.mubr.f32.gmra.mrb[0].mxu0 %v653
    %v786 = vpop.f32.mrb[0].mxu0
    %v787 = vadd.f32 %v683, %v786
    %v788 = vpop.f32.mrb[0].mxu0
    %789 = vmatprep.mubr.f32.mxu0 0.0
    %790 = vmatmul.mubr.f32.gmra.mrb[0].mxu0 %v654
    %v791 = vpop.f32.mrb[0].mxu0
    %v792 = vadd.f32 %v683, %v791
    %v793 = vpop.f32.mrb[0].mxu0
    %794 = vmatprep.mubr.f32.mxu0 0.0
    %795 = vmatmul.mubr.f32.gmra.mrb[0].mxu0 %v655
    %v796 = vpop.f32.mrb[0].mxu0
    %v797 = vadd.f32 %v683, %v796
    %v798 = vpop.f32.mrb[0].mxu0
    %799 = vmatprep.mubr.f32.mxu0 0.0
    %800 = vmatmul.mubr.f32.gmra.mrb[0].mxu0 %v656
    %v801 = vpop.f32.mrb[0].mxu0
    %v802 = vadd.f32 %v683, %v801
    %v803 = vpop.f32.mrb[0].mxu0
    %804 = vmatprep.mubr.f32.mxu0 0.0
    %805 = vmatmul.mubr.f32.gmra.mrb[0].mxu0 %v657
    %v806 = vpop.f32.mrb[0].mxu0
    %v807 = vadd.f32 %v683, %v806
    %v808 = vpop.f32.mrb[0].mxu0
    %809 = vmatprep.mubr.f32.mxu0 0.0
    %810 = vmatmul.mubr.f32.gmra.mrb[0].mxu0 %v658
    %v811 = vpop.f32.mrb[0].mxu0
    %v812 = vadd.f32 %v683, %v811
    %v813 = vpop.f32.mrb[0].mxu0
    %814 = vmatprep.mubr.f32.mxu0 0.0
    %815 = vmatmul.mubr.f32.gmra.mrb[0].mxu0 %v659
    %v816 = vpop.f32.mrb[0].mxu0
    %v817 = vadd.f32 %v683, %v816
    %v818 = vpop.f32.mrb[0].mxu0
    %819 = vmatprep.mubr.f32.mxu0 0.0
    %820 = vmatmul.mubr.f32.gmra.mrb[0].mxu0 %v660
    %v821 = vpop.f32.mrb[0].mxu0
    %v822 = vadd.f32 %v683, %v821
    %v823 = vpop.f32.mrb[0].mxu0
    %824 = vmatprep.mubr.f32.mxu0 0.0
    %825 = vmatmul.mubr.f32.gmra.mrb[0].mxu0 %v661
    %v826 = vpop.f32.mrb[0].mxu0
    %v827 = vadd.f32 %v683, %v826
    %v828 = vpop.f32.mrb[0].mxu0
    %829 = vdwg.mxu0
    %v830 = vtanh.pop %v752
    %v831 = vtanh.pop %v757
    %v832 = vtanh.pop %v762
    %v833 = vtanh.pop %v767
    %v834 = vtanh.pop %v772
    %v835 = vtanh.pop %v777
    %v836 = vtanh.pop %v782
    %v837 = vtanh.pop %v787
    %v838 = vtanh.pop %v792
    %v839 = vtanh.pop %v797
    %v840 = vtanh.pop %v802
    %v841 = vtanh.pop %v807
    %v842 = vtanh.pop %v812
    %v843 = vtanh.pop %v817
    %v844 = vtanh.pop %v822
    %v845 = vtanh.pop %v827
    %v846 = vmul.f32 %v830, 2.0
    %v847 = vmul.f32 %v831, 2.0
    %v848 = vmul.f32 %v832, 2.0
    %v849 = vmul.f32 %v833, 2.0
    %v850 = vmul.f32 %v834, 2.0
    %v851 = vmul.f32 %v835, 2.0
    %v852 = vmul.f32 %v836, 2.0
    %v853 = vmul.f32 %v837, 2.0
    %v854 = vmul.f32 %v838, 2.0
    %v855 = vmul.f32 %v839, 2.0
    %v856 = vmul.f32 %v840, 2.0
    %v857 = vmul.f32 %v841, 2.0
    %v858 = vmul.f32 %v842, 2.0
    %v859 = vmul.f32 %v843, 2.0
    %v860 = vmul.f32 %v844, 2.0
    %v861 = vmul.f32 %v845, 2.0
    %862 = vst [vmem:[%s9] sm:$0xff] %v846
    %863 = vst [vmem:[%s9 + $0x8] sm:$0xff] %v847
    %864 = vst [vmem:[%s9 + $0x10] sm:$0xff] %v848
    %865 = vst [vmem:[%s9 + $0x18] sm:$0xff] %v849
    %866 = vst [vmem:[%s9 + $0x20] sm:$0xff] %v850
    %867 = vst [vmem:[%s9 + $0x28] sm:$0xff] %v851
    %868 = vst [vmem:[%s9 + $0x30] sm:$0xff] %v852
    %869 = vst [vmem:[%s9 + $0x38] sm:$0xff] %v853
    %870 = vst [vmem:[%s9 + $0x40] sm:$0xff] %v854
    %871 = vst [vmem:[%s9 + $0x48] sm:$0xff] %v855
    %872 = vst [vmem:[%s9 + $0x50] sm:$0xff] %v856
    %873 = vst [vmem:[%s9 + $0x58] sm:$0xff] %v857
    %874 = vst [vmem:[%s9 + $0x60] sm:$0xff] %v858
    %875 = vst [vmem:[%s9 + $0x68] sm:$0xff] %v859
    %876 = vst [vmem:[%s9 + $0x70] sm:$0xff] %v860
    %877 = vst [vmem:[%s9 + $0x78] sm:$0xff] %v861
    // Predicated region
    $region46: #{actor_forward.1} parent=1 // pred_check
      _
    $region47: #{actor_forward.1} parent=1 // pred_check_branch
      %879 = sbr.rel (0) target = $region49
    $region48: #{actor_forward.1} parent=1 // pred_region
      _
    $region49: #{actor_forward.1} parent=1 // pred_fallthru
      _
    // Predicated region
    $region50: #{actor_forward.1} parent=1 // pred_check
      _
    $region51: #{actor_forward.1} parent=1 // pred_check_branch
      %881 = sbr.rel (0) target = $region53
    $region52: #{actor_forward.1} parent=1 // pred_region
      _
    $region53: #{actor_forward.1} parent=1 // pred_fallthru
      _
    %882 = vsyncpa [#allocation3], 1
    %883 = vsyncpa [#allocation5], 1

</llo_original>
